<compile_context>
chip_gen: v6e
topology: v6e:2x2x1
jax: 0.10.0
libtpu: 0.0.40
codegen_flags: <defaults>
</compile_context>

<pallas_src>
import jax
import jax.numpy as jnp
from jax.experimental import pallas as pl
from jax.experimental.pallas import tpu as pltpu

_SMALL_BYTES = 1 << 20       # below ~1 MiB launch/pipeline overhead dominates
_MIN_CHUNK_BYTES = 2 << 20   # don't split DMAs below ~2 MiB per chunk
_MAX_DMA_CHUNKS = 8          # cap on concurrently outstanding chunk DMAs


def _chunk_plan(x: jax.Array):
    """Leading-dim (start, size) chunks for the DMA copy, or None for a single
    whole-array DMA."""
    if x.ndim == 0:
        return None
    lead = int(x.shape[0])
    nbytes = x.size * jnp.dtype(x.dtype).itemsize
    if lead <= 1 or nbytes < 2 * _MIN_CHUNK_BYTES:
        return None
    n_chunks = int(min(_MAX_DMA_CHUNKS, lead, nbytes // _MIN_CHUNK_BYTES))
    base, rem = divmod(lead, n_chunks)
    chunks, start = [], 0
    for c in range(n_chunks):
        size = base + (1 if c < rem else 0)
        chunks.append((start, size))
        start += size
    return chunks


def _make_dma_copy_kernel(chunks):
    """Kernel: issue all chunk DMAs (HBM->HBM), then wait on all of them."""

    def kernel(x_hbm, o_hbm, sems):
        if chunks is None:
            copies = [pltpu.make_async_copy(x_hbm, o_hbm, sems.at[0])]
        else:
            copies = [
                pltpu.make_async_copy(
                    x_hbm.at[pl.ds(start, size)],
                    o_hbm.at[pl.ds(start, size)],
                    sems.at[c],
                )
                for c, (start, size) in enumerate(chunks)
            ]
        for cp in copies:
            cp.start()
        for cp in copies:
            cp.wait()

    return kernel


def pallas_copy(x: jax.Array) -> jax.Array:
    """Materialized copy of `x` via an HBM->HBM DMA-only Pallas TPU kernel."""
    if x.size == 0:
        return x
    chunks = _chunk_plan(x)
    n_sems = 1 if chunks is None else len(chunks)
    nbytes = x.size * jnp.dtype(x.dtype).itemsize
    return pl.pallas_call(
        _make_dma_copy_kernel(chunks),
        out_shape=jax.ShapeDtypeStruct(x.shape, x.dtype),
        in_specs=[pl.BlockSpec(memory_space=pl.ANY)],
        out_specs=pl.BlockSpec(memory_space=pl.ANY),
        scratch_shapes=[pltpu.SemaphoreType.DMA((n_sems,))],
        cost_estimate=pl.CostEstimate(
            flops=0, transcendentals=0, bytes_accessed=2 * nbytes),
    )(x)


def pallas_identity(x: jax.Array) -> jax.Array:
    """Identity pass over `x`.

    A true pass-through is a no-op, so small tensors are returned as-is
    (kernel launch overhead would dominate). Larger tensors are materialized
    through the DMA-only copy kernel, which is the cheapest way to produce a
    fresh buffer (no TensorCore work, no VMEM staging).
    """
    if x.size == 0 or x.size * jnp.dtype(x.dtype).itemsize < _SMALL_BYTES:
        return x
    return pallas_copy(x)


class BaseLM:
    """JAX/Pallas equivalent of the PyTorch BaseLM abstract base class."""

    def __init__(self, params):
        # BaseLM owns no parameters of its own; it only stores the config.
        self.params = params

    def forward(self, inputs, targets):
        # TODO(synk): BaseLM.forward is abstract in the PyTorch source (raises
        # NotImplementedError); a concrete subclass should implement the real
        # LM hot path (e.g. fused hidden@vocab matmul + xent) as its own
        # MXU-aligned Pallas kernel rather than extending this copy template.
        raise NotImplementedError

    def set_epoch(self, epoch):
        pass


if __name__ == "__main__":
    # Small deterministic example shapes consistent with an LM interface.
    batch, seq, vocab = 2, 8, 32
    key = jax.random.PRNGKey(0)
    k_in, k_tgt = jax.random.split(key)
    inputs = jax.random.randint(k_in, (batch, seq), 0, vocab, dtype=jnp.int32)
    targets = jax.random.randint(k_tgt, (batch, seq), 0, vocab, dtype=jnp.int32)

    model = BaseLM(params={"vocab_size": vocab})
    model.set_epoch(0)

    # Faithful semantics: the abstract forward must raise.
    raised = False
    try:
        model.forward(inputs, targets)
    except NotImplementedError:
        raised = True
    assert raised, "BaseLM.forward must raise NotImplementedError"

    # Kernel path #1: tiny interface-shaped tensor -> single whole-array DMA.
    out = jax.block_until_ready(pallas_copy(inputs))
    assert out.shape == inputs.shape and out.dtype == inputs.dtype
    assert bool(jnp.all(out == inputs))

    # Kernel path #2: larger tensor (8 MiB) -> chunked HBM->HBM DMA plan,
    # reached through pallas_identity's large-input branch.
    big = jax.random.normal(jax.random.PRNGKey(1), (2048, 1024), dtype=jnp.float32)
    out_big = jax.block_until_ready(pallas_identity(big))
    assert out_big.shape == big.shape and out_big.dtype == big.dtype
    assert bool(jnp.all(out_big == big))

    # Small-input fast path: identity is a no-op, no kernel launch.
    small_out = pallas_identity(inputs)
    assert small_out is inputs

    print("KERNEL_OK")
</pallas_src>

<mosaic_0001>
module attributes {stable_mosaic.version = 11 : i64} {
  func.func @kernel(%arg0: memref<2x8xi32, #tpu.memory_space<any>>, %arg1: memref<2x8xi32, #tpu.memory_space<any>>, %arg2: memref<1x!tpu.dma_semaphore, #tpu.memory_space<semaphore_mem>>) attributes {dimension_semantics = [], scalar_prefetch = 0 : i64, scratch_operands = 1 : i64, tpu.core_type = #tpu.core_type<tc>} {
    %c0_i32 = arith.constant 0 : i32
    %0 = tpu.memref_slice %arg2[%c0_i32] : memref<1x!tpu.dma_semaphore, #tpu.memory_space<semaphore_mem>> -> memref<1x!tpu.dma_semaphore, #tpu.memory_space<semaphore_mem>>
    %1 = tpu.memref_squeeze %0 : memref<1x!tpu.dma_semaphore, #tpu.memory_space<semaphore_mem>> -> memref<!tpu.dma_semaphore, #tpu.memory_space<semaphore_mem>>
    tpu.enqueue_dma source(%arg0 : memref<2x8xi32, #tpu.memory_space<any>>) target(%arg1 : memref<2x8xi32, #tpu.memory_space<any>>) target_semaphore(%1 : memref<!tpu.dma_semaphore, #tpu.memory_space<semaphore_mem>>)
    %c0_i32_0 = arith.constant 0 : i32
    %2 = tpu.memref_slice %arg2[%c0_i32_0] : memref<1x!tpu.dma_semaphore, #tpu.memory_space<semaphore_mem>> -> memref<1x!tpu.dma_semaphore, #tpu.memory_space<semaphore_mem>>
    %3 = tpu.memref_squeeze %2 : memref<1x!tpu.dma_semaphore, #tpu.memory_space<semaphore_mem>> -> memref<!tpu.dma_semaphore, #tpu.memory_space<semaphore_mem>>
    tpu.wait_dma2 semaphore(%3 : memref<!tpu.dma_semaphore, #tpu.memory_space<semaphore_mem>>) src(%arg0 : memref<2x8xi32, #tpu.memory_space<any>>) dst(%arg1 : memref<2x8xi32, #tpu.memory_space<any>>)
    return
  }
}

</mosaic_0001>

<llo_original>
// kernel: tpu_custom_call.1
$region0: #{tpu_custom_call.1}
  #allocation0 [shape = 'u32[]', space=smem, size = 0x4, offset = 0x4, fixed_abs, tag = 'smem constant byte address 0x4 - core index']
  #allocation1 [shape = 'u32[144,128]{1,0:T(1,128)}', space=vmem, size = 0x12000, scoped, tag = 'internal scratch']
  #allocation2 [shape = 's32[1]{0}', space=sflag, size = 0x4, scoped, tag = 'scratch operand']
  #allocation3 [shape = 's32[]', space=sflag, size = 0x4, offset = 0, fixed_abs, tag = 'sflag constant byte address 0x0 - dummy sync flag']
  #allocation4 [shape = 'u32[0]{0}', space=smem, size = 0, offset = 0, fixed_abs, tag = 'smem constant byte address 0x0 - null']
  %s0 = inlined_call_operand.hbm [shape: s32[2,8], index: 0, kind: input, shape index: {}]
  %s1 = inlined_call_operand.hbm [shape: s32[2,8], index: 1, kind: output, shape index: {}]
  %s2 = sld [smem:[#allocation0]]
  $region2: #{tpu_custom_call.1} parent=0
    _
  %s4 = ssub.s32 1, %s2
  %s5 = scalar_select 0, %s4, %s2
  %s7 = sshll.u32 1, 14
  %s8 = sxor.u32 4294967295, %s7
  %12 = dma.general %s0, 32, %s1, [#allocation2], 131072, [#allocation4], 0, 0
  %s13 = smul.u32 2, 1
  %s14 = sshll.u32 %s13, 4
  %15 = dma.done [#allocation2], %s14
  %16 = vsyncmov [#allocation2]
  %s17 = vpop.sfrf %16
  %p18 = scmp.eq.s32.totalorder %s17, 0
  %p19 = pneg %p18
  %21 = shalt.err (%p19)

</llo_original>
